<compile_context>
chip_gen: v5e
topology: v5e:2x2
jax: 0.10.0
libtpu: 0.0.40
codegen_flags: <defaults>
</compile_context>

<pallas_src>
import jax
import jax.numpy as jnp
from jax.experimental import pallas as pl
from jax.experimental.pallas import tpu as pltpu


def _round_up(x, m):
    return (x + m - 1) // m * m


# ---------------------------------------------------------------------------
# Pallas kernel: fused  o = relu( relu(P @ W1 + b1) @ W2 + b2 )
# ---------------------------------------------------------------------------
def _fused_dense_block_kernel(p_ref, w1_ref, b1_ref, w2_ref, b2_ref, o_ref):
    h = jnp.dot(p_ref[...], w1_ref[...], preferred_element_type=jnp.float32)
    h = jnp.maximum(h + b1_ref[...], 0.0)            # ReLU of first ConvLayer
    h = h.astype(w2_ref.dtype)                       # bf16 for second MXU pass
    o = jnp.dot(h, w2_ref[...], preferred_element_type=jnp.float32)
    o = jnp.maximum(o + b2_ref[...], 0.0)            # ReLU of second ConvLayer
    o_ref[...] = o.astype(o_ref.dtype)


def _fused_dense_block_matmul(patches, w1, b1, w2, b2,
                              *, compute_dtype=jnp.bfloat16):
    """patches: [M, K] f32, w1: [K, C1], b1: [C1], w2: [C1, C2], b2: [C2].
    Returns relu(relu(patches@w1+b1)@w2+b2) as [M, C2] f32."""
    M, K = patches.shape
    C1 = w1.shape[1]
    C2 = w2.shape[1]

    Kp = _round_up(K, 128)
    C1p = _round_up(C1, 128)
    C2p = _round_up(C2, 128)

    # Conservative per-call VMEM estimate (double-buffered P/out tiles,
    # resident weights, intermediate h) -> pick the largest tile that fits.
    def vmem_bytes(tm):
        tiles = 2 * tm * Kp * 2 + 2 * tm * C2p * 4           # bf16 in, f32 out
        weights = Kp * C1p * 2 + C1p * C2p * 2 + (C1p + C2p) * 4
        scratch = tm * C1p * 4                                # intermediate h
        return tiles + weights + scratch

    tm = 8
    for cand in (1024, 512, 256, 128, 64, 32, 16, 8):
        if vmem_bytes(cand) <= 20 * 1024 * 1024:
            tm = cand
            break
    tm = min(tm, _round_up(M, 8))          # don't over-pad tiny inputs
    Mp = _round_up(M, tm)

    # Zero-padding preserves exact semantics: zero K-rows of W1 contribute 0,
    # padded hidden channels are relu(0)=0 and hit zero rows of W2, padded
    # output channels are sliced off below.
    p_pad = jnp.pad(patches, ((0, Mp - M), (0, Kp - K))).astype(compute_dtype)
    w1_pad = jnp.pad(w1, ((0, Kp - K), (0, C1p - C1))).astype(compute_dtype)
    b1_pad = jnp.pad(b1.reshape(1, -1).astype(jnp.float32),
                     ((0, 0), (0, C1p - C1)))
    w2_pad = jnp.pad(w2, ((0, C1p - C1), (0, C2p - C2))).astype(compute_dtype)
    b2_pad = jnp.pad(b2.reshape(1, -1).astype(jnp.float32),
                     ((0, 0), (0, C2p - C2)))

    out = pl.pallas_call(
        _fused_dense_block_kernel,
        out_shape=jax.ShapeDtypeStruct((Mp, C2p), jnp.float32),
        grid_spec=pltpu.PrefetchScalarGridSpec(
            num_scalar_prefetch=0,
            grid=(Mp // tm,),
            in_specs=[
                pl.BlockSpec((tm, Kp), lambda i: (i, 0)),     # patch row tile
                pl.BlockSpec((Kp, C1p), lambda i: (0, 0)),    # W1 (resident)
                pl.BlockSpec((1, C1p), lambda i: (0, 0)),     # b1 (resident)
                pl.BlockSpec((C1p, C2p), lambda i: (0, 0)),   # W2 (resident)
                pl.BlockSpec((1, C2p), lambda i: (0, 0)),     # b2 (resident)
            ],
            out_specs=pl.BlockSpec((tm, C2p), lambda i: (i, 0)),
        ),
        compiler_params=pltpu.CompilerParams(
            dimension_semantics=("parallel",),     # megacore-shard row tiles
            vmem_limit_bytes=32 * 1024 * 1024),
    )(p_pad, w1_pad, b1_pad, w2_pad, b2_pad)

    return out[:M, :C2]


# ---------------------------------------------------------------------------
# NHWC im2col glue (lane-friendly: channels last).  K ordering is (kh, kw, C).
# ---------------------------------------------------------------------------
def _im2col_nhwc(x_nhwc, kernel_size, stride):
    """x_nhwc: [N, Hp, Wp, C] (already reflection-padded)."""
    N, Hp, Wp, C = x_nhwc.shape
    k = kernel_size
    Ho = (Hp - k) // stride + 1
    Wo = (Wp - k) // stride + 1
    if k == 1:
        p = x_nhwc[:, ::stride, ::stride, :]
        return p.reshape(N * Ho * Wo, C), Ho, Wo
    # TODO(synk): for very large inputs, gather patches inside the kernel
    # (k*k shifted sub-matmuls) instead of materializing them here.
    cols = []
    for di in range(k):
        for dj in range(k):
            cols.append(x_nhwc[:, di:di + stride * Ho:stride,
                                  dj:dj + stride * Wo:stride, :])   # [N,Ho,Wo,C]
    p = jnp.stack(cols, axis=3)                     # [N, Ho, Wo, k*k, C]
    return p.reshape(N * Ho * Wo, k * k * C), Ho, Wo


# ---------------------------------------------------------------------------
# DenseBlock_light forward (NCHW in / NCHW out, like PyTorch)
# ---------------------------------------------------------------------------
def dense_block_light_forward(x, params, kernel_size, stride,
                              compute_dtype=jnp.bfloat16):
    """x: [N, Cin, H, W]; params = (w1, b1, w2, b2) in PyTorch layouts."""
    w1, b1, w2, b2 = params
    k = kernel_size
    pad = k // 2

    N, Cin, H, W = x.shape
    C1 = w1.shape[0]
    C2 = w2.shape[0]

    # One NCHW -> NHWC conversion at the module boundary.
    x = jnp.transpose(x, (0, 2, 3, 1))
    if pad > 0:
        x = jnp.pad(x, ((0, 0), (pad, pad), (pad, pad), (0, 0)), mode="reflect")

    patches, Ho, Wo = _im2col_nhwc(x, k, stride)        # K order: (kh, kw, Cin)

    # Re-layout PyTorch weights to match the (kh, kw, Cin) K ordering.
    w1_mat = jnp.transpose(w1, (2, 3, 1, 0)).reshape(k * k * Cin, C1)
    w2_mat = w2.reshape(C2, C1).T                        # 1x1 conv -> [C1, C2]

    out = _fused_dense_block_matmul(patches, w1_mat, b1, w2_mat, b2,
                                    compute_dtype=compute_dtype)     # [M, C2]
    out = out.reshape(N, Ho, Wo, C2)

    # Second ConvLayer is 1x1 with the same stride: for stride > 1 its output
    # is exactly the strided subsample of the stride-1 result computed above.
    if stride > 1:
        out = out[:, ::stride, ::stride, :]

    # NHWC -> NCHW only once, at the module boundary.
    return jnp.transpose(out, (0, 3, 1, 2))


def init_params(key, in_channels, out_channels, kernel_size):
    """Match PyTorch Conv2d default init (U(-1/sqrt(fan_in), 1/sqrt(fan_in)))."""
    out_channels_def = in_channels // 2
    k1, k2, k3, k4 = jax.random.split(key, 4)

    def uinit(key, shape, fan_in):
        bound = 1.0 / jnp.sqrt(fan_in)
        return jax.random.uniform(key, shape, jnp.float32, -bound, bound)

    fan1 = in_channels * kernel_size * kernel_size
    w1 = uinit(k1, (out_channels_def, in_channels, kernel_size, kernel_size), fan1)
    b1 = uinit(k2, (out_channels_def,), fan1)
    fan2 = out_channels_def * 1 * 1
    w2 = uinit(k3, (out_channels, out_channels_def, 1, 1), fan2)
    b2 = uinit(k4, (out_channels,), fan2)
    return (w1, b1, w2, b2)


# ---------------------------------------------------------------------------
# Pure-JAX f32 reference (for verification only)
# ---------------------------------------------------------------------------
def _ref_conv_layer(x, w, b, kernel_size, stride):
    pad = kernel_size // 2
    if pad > 0:
        x = jnp.pad(x, ((0, 0), (0, 0), (pad, pad), (pad, pad)), mode="reflect")
    out = jax.lax.conv_general_dilated(
        x, w, window_strides=(stride, stride), padding="VALID",
        dimension_numbers=("NCHW", "OIHW", "NCHW"))
    out = out + b.reshape(1, -1, 1, 1)
    return jnp.maximum(out, 0.0)


def _ref_dense_block(x, params, kernel_size, stride):
    w1, b1, w2, b2 = params
    h = _ref_conv_layer(x, w1, b1, kernel_size, stride)
    return _ref_conv_layer(h, w2, b2, 1, stride)


if __name__ == "__main__":
    # DenseBlock_light(in_channels=4, out_channels=8, kernel_size=3, stride=1)
    # on x: [2, 4, 16, 16] (NCHW).
    in_channels, out_channels, kernel_size, stride = 4, 8, 3, 1

    key = jax.random.PRNGKey(0)
    kx, kp = jax.random.split(key)
    x = jax.random.normal(kx, (2, in_channels, 16, 16), dtype=jnp.float32)
    params = init_params(kp, in_channels, out_channels, kernel_size)

    fwd = jax.jit(dense_block_light_forward,
                  static_argnames=("kernel_size", "stride"))
    out = fwd(x, params, kernel_size=kernel_size, stride=stride)
    out = jax.block_until_ready(out)

    ref = jax.block_until_ready(_ref_dense_block(x, params, kernel_size, stride))
    assert out.shape == (2, out_channels, 16, 16)
    # bf16 inputs / f32 accumulation -> slightly looser tolerance than pure f32.
    assert jnp.allclose(out, ref, atol=3e-2, rtol=3e-2), (
        float(jnp.max(jnp.abs(out - ref))))

    print("KERNEL_OK")
</pallas_src>

<mosaic_0001>
module attributes {stable_mosaic.version = 11 : i64} {
  func.func @_fused_dense_block_kernel(%arg0: i32, %arg1: memref<512x128xbf16, #tpu.memory_space<vmem>>, %arg2: memref<128x128xbf16, #tpu.memory_space<vmem>>, %arg3: memref<1x128xf32, #tpu.memory_space<vmem>>, %arg4: memref<128x128xbf16, #tpu.memory_space<vmem>>, %arg5: memref<1x128xf32, #tpu.memory_space<vmem>>, %arg6: memref<512x128xf32, #tpu.memory_space<vmem>>) attributes {dimension_semantics = [#tpu.dimension_semantics<parallel>], iteration_bounds = array<i64: 1>, scalar_prefetch = 0 : i64, scratch_operands = 0 : i64, tpu.core_type = #tpu.core_type<tc>, window_params = [{transform_indices = @transform_0, window_bounds = array<i64: 512, 128>}, {pipeline_mode = #tpu.pipeline_mode<synchronous>, transform_indices = @transform_1, window_bounds = array<i64: 128, 128>}, {pipeline_mode = #tpu.pipeline_mode<synchronous>, transform_indices = @transform_2, window_bounds = array<i64: 1, 128>}, {pipeline_mode = #tpu.pipeline_mode<synchronous>, transform_indices = @transform_3, window_bounds = array<i64: 128, 128>}, {pipeline_mode = #tpu.pipeline_mode<synchronous>, transform_indices = @transform_4, window_bounds = array<i64: 1, 128>}, {transform_indices = @transform_5, window_bounds = array<i64: 512, 128>}]} {
    %c0 = arith.constant 0 : index
    %c0_0 = arith.constant 0 : index
    %0 = vector.load %arg1[%c0, %c0_0] : memref<512x128xbf16, #tpu.memory_space<vmem>>, vector<512x128xbf16>
    %c0_1 = arith.constant 0 : index
    %c0_2 = arith.constant 0 : index
    %1 = vector.load %arg2[%c0_1, %c0_2] : memref<128x128xbf16, #tpu.memory_space<vmem>>, vector<128x128xbf16>
    %cst = arith.constant dense<0.000000e+00> : vector<512x128xf32>
    %2 = tpu.matmul %0, %1, %cst {dimension_numbers = #tpu.dot_dimension_numbers<[1], [0], [0], [1], [0, 0, 1, 1], [], []>} : vector<512x128xbf16>, vector<128x128xbf16>, vector<512x128xf32> -> vector<512x128xf32>
    %c0_3 = arith.constant 0 : index
    %c0_4 = arith.constant 0 : index
    %3 = vector.load %arg3[%c0_3, %c0_4] : memref<1x128xf32, #tpu.memory_space<vmem>>, vector<1x128xf32>
    %4 = vector.broadcast %3 : vector<1x128xf32> to vector<512x128xf32>
    %5 = arith.addf %2, %4 : vector<512x128xf32>
    %cst_5 = arith.constant 0.000000e+00 : f32
    %6 = vector.broadcast %cst_5 : f32 to vector<512x128xf32>
    %7 = arith.maximumf %5, %6 : vector<512x128xf32>
    %8 = arith.truncf %7 : vector<512x128xf32> to vector<512x128xbf16>
    %c0_6 = arith.constant 0 : index
    %c0_7 = arith.constant 0 : index
    %9 = vector.load %arg4[%c0_6, %c0_7] : memref<128x128xbf16, #tpu.memory_space<vmem>>, vector<128x128xbf16>
    %cst_8 = arith.constant dense<0.000000e+00> : vector<512x128xf32>
    %10 = tpu.matmul %8, %9, %cst_8 {dimension_numbers = #tpu.dot_dimension_numbers<[1], [0], [0], [1], [0, 0, 1, 1], [], []>} : vector<512x128xbf16>, vector<128x128xbf16>, vector<512x128xf32> -> vector<512x128xf32>
    %c0_9 = arith.constant 0 : index
    %c0_10 = arith.constant 0 : index
    %11 = vector.load %arg5[%c0_9, %c0_10] : memref<1x128xf32, #tpu.memory_space<vmem>>, vector<1x128xf32>
    %12 = vector.broadcast %11 : vector<1x128xf32> to vector<512x128xf32>
    %13 = arith.addf %10, %12 : vector<512x128xf32>
    %cst_11 = arith.constant 0.000000e+00 : f32
    %14 = vector.broadcast %cst_11 : f32 to vector<512x128xf32>
    %15 = arith.maximumf %13, %14 : vector<512x128xf32>
    %c0_12 = arith.constant 0 : index
    %c0_13 = arith.constant 0 : index
    %16 = vector.load %arg6[%c0_12, %c0_13] : memref<512x128xf32, #tpu.memory_space<vmem>>, vector<512x128xf32>
    tpu.vector_store %arg6[%c0_12, %c0_13], %15 {strides = array<i32>} : memref<512x128xf32, #tpu.memory_space<vmem>>, vector<512x128xf32>,
    return
  }
  func.func @transform_0(%arg0: i32) -> (i32, i32) {
    %c0_i32 = arith.constant 0 : i32
    %c0_i32_0 = arith.constant 0 : i32
    return %arg0, %c0_i32 : i32, i32
  }
  func.func @transform_1(%arg0: i32) -> (i32, i32) {
    %c0_i32 = arith.constant 0 : i32
    %c0_i32_0 = arith.constant 0 : i32
    %c0_i32_1 = arith.constant 0 : i32
    return %c0_i32, %c0_i32_0 : i32, i32
  }
  func.func @transform_2(%arg0: i32) -> (i32, i32) {
    %c0_i32 = arith.constant 0 : i32
    %c0_i32_0 = arith.constant 0 : i32
    %c0_i32_1 = arith.constant 0 : i32
    return %c0_i32, %c0_i32_0 : i32, i32
  }
  func.func @transform_3(%arg0: i32) -> (i32, i32) {
    %c0_i32 = arith.constant 0 : i32
    %c0_i32_0 = arith.constant 0 : i32
    %c0_i32_1 = arith.constant 0 : i32
    return %c0_i32, %c0_i32_0 : i32, i32
  }
  func.func @transform_4(%arg0: i32) -> (i32, i32) {
    %c0_i32 = arith.constant 0 : i32
    %c0_i32_0 = arith.constant 0 : i32
    %c0_i32_1 = arith.constant 0 : i32
    return %c0_i32, %c0_i32_0 : i32, i32
  }
  func.func @transform_5(%arg0: i32) -> (i32, i32) {
    %c0_i32 = arith.constant 0 : i32
    %c0_i32_0 = arith.constant 0 : i32
    return %arg0, %c0_i32 : i32, i32
  }
}

</mosaic_0001>

<llo_original>
// kernel: dense_block_light_forward.1
$region0: #{dense_block_light_forward.1}
  #allocation0 [shape = 'u32[]', space=smem, size = 0x4, offset = 0x4, fixed_abs, tag = 'smem constant byte address 0x4 - core index']
  #allocation1 [shape = 'u32[72,128]{1,0:T(1,128)}', space=vmem, size = 0x9000, scoped, tag = 'internal scratch']
  %s0 = inlined_call_operand.vmem [shape: bf16[512,128], index: 0, kind: input, shape index: {}]
  %s1 = inlined_call_operand.vmem [shape: bf16[128,128], index: 1, kind: input, shape index: {}]
  %s2 = inlined_call_operand.vmem [shape: f32[1,128], index: 2, kind: input, shape index: {}]
  %s3 = inlined_call_operand.vmem [shape: bf16[128,128], index: 3, kind: input, shape index: {}]
  %s4 = inlined_call_operand.vmem [shape: f32[1,128], index: 4, kind: input, shape index: {}]
  %s5 = inlined_call_operand.vmem [shape: f32[512,128], index: 5, kind: output, shape index: {}]
  %s6 = sld [smem:[#allocation0]]
  $region30: #{dense_block_light_forward.1} parent=0
    _
  %s8 = ssub.s32 1, %s6
  %s9 = scalar_select 0, %s8, %s6
  // Predicated region
  $region2: #{dense_block_light_forward.1} parent=0 // pred_check
    _
  $region3: #{dense_block_light_forward.1} parent=0 // pred_check_branch
    %11 = sbr.rel (0) target = $region5
  $region4: #{dense_block_light_forward.1} parent=0 // pred_region
    _
  $region5: #{dense_block_light_forward.1} parent=0 // pred_fallthru
    _
  // Predicated region
  $region6: #{dense_block_light_forward.1} parent=0 // pred_check
    _
  $region7: #{dense_block_light_forward.1} parent=0 // pred_check_branch
    %13 = sbr.rel (0) target = $region9
  $region8: #{dense_block_light_forward.1} parent=0 // pred_region
    _
  $region9: #{dense_block_light_forward.1} parent=0 // pred_fallthru
    _
  // Predicated region
  $region10: #{dense_block_light_forward.1} parent=0 // pred_check
    _
  $region11: #{dense_block_light_forward.1} parent=0 // pred_check_branch
    %15 = sbr.rel (0) target = $region13
  $region12: #{dense_block_light_forward.1} parent=0 // pred_region
    _
  $region13: #{dense_block_light_forward.1} parent=0 // pred_fallthru
    _
  // Predicated region
  $region14: #{dense_block_light_forward.1} parent=0 // pred_check
    _
  $region15: #{dense_block_light_forward.1} parent=0 // pred_check_branch
    %17 = sbr.rel (0) target = $region17
  $region16: #{dense_block_light_forward.1} parent=0 // pred_region
    _
  $region17: #{dense_block_light_forward.1} parent=0 // pred_fallthru
    _
  // Predicated region
  $region18: #{dense_block_light_forward.1} parent=0 // pred_check
    _
  $region19: #{dense_block_light_forward.1} parent=0 // pred_check_branch
    %19 = sbr.rel (0) target = $region21
  $region20: #{dense_block_light_forward.1} parent=0 // pred_region
    _
  $region21: #{dense_block_light_forward.1} parent=0 // pred_fallthru
    _
  %v20 = vld [vmem:[%s0] sm:$0xf]
  %v21 = vld [vmem:[%s0 + $0x4] sm:$0xf]
  %v22 = vld [vmem:[%s0 + $0x8] sm:$0xf]
  %v23 = vld [vmem:[%s0 + $0xc] sm:$0xf]
  %v24 = vld [vmem:[%s0 + $0x10] sm:$0xf]
  %v25 = vld [vmem:[%s0 + $0x14] sm:$0xf]
  %v26 = vld [vmem:[%s0 + $0x18] sm:$0xf]
  %v27 = vld [vmem:[%s0 + $0x1c] sm:$0xf]
  %v28 = vld [vmem:[%s0 + $0x20] sm:$0xf]
  %v29 = vld [vmem:[%s0 + $0x24] sm:$0xf]
  %v30 = vld [vmem:[%s0 + $0x28] sm:$0xf]
  %v31 = vld [vmem:[%s0 + $0x2c] sm:$0xf]
  %v32 = vld [vmem:[%s0 + $0x30] sm:$0xf]
  %v33 = vld [vmem:[%s0 + $0x34] sm:$0xf]
  %v34 = vld [vmem:[%s0 + $0x38] sm:$0xf]
  %v35 = vld [vmem:[%s0 + $0x3c] sm:$0xf]
  %v36 = vld [vmem:[%s0 + $0x40] sm:$0xf]
  %v37 = vld [vmem:[%s0 + $0x44] sm:$0xf]
  %v38 = vld [vmem:[%s0 + $0x48] sm:$0xf]
  %v39 = vld [vmem:[%s0 + $0x4c] sm:$0xf]
  %v40 = vld [vmem:[%s0 + $0x50] sm:$0xf]
  %v41 = vld [vmem:[%s0 + $0x54] sm:$0xf]
  %v42 = vld [vmem:[%s0 + $0x58] sm:$0xf]
  %v43 = vld [vmem:[%s0 + $0x5c] sm:$0xf]
  %v44 = vld [vmem:[%s0 + $0x60] sm:$0xf]
  %v45 = vld [vmem:[%s0 + $0x64] sm:$0xf]
  %v46 = vld [vmem:[%s0 + $0x68] sm:$0xf]
  %v47 = vld [vmem:[%s0 + $0x6c] sm:$0xf]
  %v48 = vld [vmem:[%s0 + $0x70] sm:$0xf]
  %v49 = vld [vmem:[%s0 + $0x74] sm:$0xf]
  %v50 = vld [vmem:[%s0 + $0x78] sm:$0xf]
  %v51 = vld [vmem:[%s0 + $0x7c] sm:$0xf]
  %v52 = vld [vmem:[%s0 + $0x80] sm:$0xf]
  %v53 = vld [vmem:[%s0 + $0x84] sm:$0xf]
  %v54 = vld [vmem:[%s0 + $0x88] sm:$0xf]
  %v55 = vld [vmem:[%s0 + $0x8c] sm:$0xf]
  %v56 = vld [vmem:[%s0 + $0x90] sm:$0xf]
  %v57 = vld [vmem:[%s0 + $0x94] sm:$0xf]
  %v58 = vld [vmem:[%s0 + $0x98] sm:$0xf]
  %v59 = vld [vmem:[%s0 + $0x9c] sm:$0xf]
  %v60 = vld [vmem:[%s0 + $0xa0] sm:$0xf]
  %v61 = vld [vmem:[%s0 + $0xa4] sm:$0xf]
  %v62 = vld [vmem:[%s0 + $0xa8] sm:$0xf]
  %v63 = vld [vmem:[%s0 + $0xac] sm:$0xf]
  %v64 = vld [vmem:[%s0 + $0xb0] sm:$0xf]
  %v65 = vld [vmem:[%s0 + $0xb4] sm:$0xf]
  %v66 = vld [vmem:[%s0 + $0xb8] sm:$0xf]
  %v67 = vld [vmem:[%s0 + $0xbc] sm:$0xf]
  %v68 = vld [vmem:[%s0 + $0xc0] sm:$0xf]
  %v69 = vld [vmem:[%s0 + $0xc4] sm:$0xf]
  %v70 = vld [vmem:[%s0 + $0xc8] sm:$0xf]
  %v71 = vld [vmem:[%s0 + $0xcc] sm:$0xf]
  %v72 = vld [vmem:[%s0 + $0xd0] sm:$0xf]
  %v73 = vld [vmem:[%s0 + $0xd4] sm:$0xf]
  %v74 = vld [vmem:[%s0 + $0xd8] sm:$0xf]
  %v75 = vld [vmem:[%s0 + $0xdc] sm:$0xf]
  %v76 = vld [vmem:[%s0 + $0xe0] sm:$0xf]
  %v77 = vld [vmem:[%s0 + $0xe4] sm:$0xf]
  %v78 = vld [vmem:[%s0 + $0xe8] sm:$0xf]
  %v79 = vld [vmem:[%s0 + $0xec] sm:$0xf]
  %v80 = vld [vmem:[%s0 + $0xf0] sm:$0xf]
  %v81 = vld [vmem:[%s0 + $0xf4] sm:$0xf]
  %v82 = vld [vmem:[%s0 + $0xf8] sm:$0xf]
  %v83 = vld [vmem:[%s0 + $0xfc] sm:$0xf]
  %v84 = vld [vmem:[%s1] sm:$0xf]
  %v85 = vld [vmem:[%s1 + $0x4] sm:$0xf]
  %v86 = vld [vmem:[%s1 + $0x8] sm:$0xf]
  %v87 = vld [vmem:[%s1 + $0xc] sm:$0xf]
  %v88 = vld [vmem:[%s1 + $0x10] sm:$0xf]
  %v89 = vld [vmem:[%s1 + $0x14] sm:$0xf]
  %v90 = vld [vmem:[%s1 + $0x18] sm:$0xf]
  %v91 = vld [vmem:[%s1 + $0x1c] sm:$0xf]
  %v92 = vld [vmem:[%s1 + $0x20] sm:$0xf]
  %v93 = vld [vmem:[%s1 + $0x24] sm:$0xf]
  %v94 = vld [vmem:[%s1 + $0x28] sm:$0xf]
  %v95 = vld [vmem:[%s1 + $0x2c] sm:$0xf]
  %v96 = vld [vmem:[%s1 + $0x30] sm:$0xf]
  %v97 = vld [vmem:[%s1 + $0x34] sm:$0xf]
  %v98 = vld [vmem:[%s1 + $0x38] sm:$0xf]
  %v99 = vld [vmem:[%s1 + $0x3c] sm:$0xf]
  %v100 = vld [vmem:[%s2] sm:$0x1]
  %v102 = vperm.slane %v100, 0
  %v168 = vunpack.c.l.b16 %v20
  %v169 = vunpack.c.l.b16 %v21
  %v170 = vunpack.c.l.b16 %v22
  %v171 = vunpack.c.l.b16 %v23
  %v172 = vunpack.c.l.b16 %v24
  %v173 = vunpack.c.l.b16 %v25
  %v174 = vunpack.c.l.b16 %v26
  %v175 = vunpack.c.l.b16 %v27
  %v176 = vunpack.c.l.b16 %v28
  %v177 = vunpack.c.l.b16 %v29
  %v178 = vunpack.c.l.b16 %v30
  %v179 = vunpack.c.l.b16 %v31
  %v180 = vunpack.c.l.b16 %v32
  %v181 = vunpack.c.l.b16 %v33
  %v182 = vunpack.c.l.b16 %v34
  %v183 = vunpack.c.l.b16 %v35
  %v184 = vunpack.c.l.b16 %v36
  %v185 = vunpack.c.l.b16 %v37
  %v186 = vunpack.c.l.b16 %v38
  %v187 = vunpack.c.l.b16 %v39
  %v188 = vunpack.c.l.b16 %v40
  %v189 = vunpack.c.l.b16 %v41
  %v190 = vunpack.c.l.b16 %v42
  %v191 = vunpack.c.l.b16 %v43
  %v192 = vunpack.c.l.b16 %v44
  %v193 = vunpack.c.l.b16 %v45
  %v194 = vunpack.c.l.b16 %v46
  %v195 = vunpack.c.l.b16 %v47
  %v196 = vunpack.c.l.b16 %v48
  %v197 = vunpack.c.l.b16 %v49
  %v198 = vunpack.c.l.b16 %v50
  %v199 = vunpack.c.l.b16 %v51
  %v200 = vunpack.c.l.b16 %v52
  %v201 = vunpack.c.l.b16 %v53
  %v202 = vunpack.c.l.b16 %v54
  %v203 = vunpack.c.l.b16 %v55
  %v204 = vunpack.c.l.b16 %v56
  %v205 = vunpack.c.l.b16 %v57
  %v206 = vunpack.c.l.b16 %v58
  %v207 = vunpack.c.l.b16 %v59
  %v208 = vunpack.c.l.b16 %v60
  %v209 = vunpack.c.l.b16 %v61
  %v210 = vunpack.c.l.b16 %v62
  %v211 = vunpack.c.l.b16 %v63
  %v212 = vunpack.c.l.b16 %v64
  %v213 = vunpack.c.l.b16 %v65
  %v214 = vunpack.c.l.b16 %v66
  %v215 = vunpack.c.l.b16 %v67
  %v216 = vunpack.c.l.b16 %v68
  %v217 = vunpack.c.l.b16 %v69
  %v218 = vunpack.c.l.b16 %v70
  %v219 = vunpack.c.l.b16 %v71
  %v220 = vunpack.c.l.b16 %v72
  %v221 = vunpack.c.l.b16 %v73
  %v222 = vunpack.c.l.b16 %v74
  %v223 = vunpack.c.l.b16 %v75
  %v224 = vunpack.c.l.b16 %v76
  %v225 = vunpack.c.l.b16 %v77
  %v226 = vunpack.c.l.b16 %v78
  %v227 = vunpack.c.l.b16 %v79
  %v228 = vunpack.c.l.b16 %v80
  %v229 = vunpack.c.l.b16 %v81
  %v230 = vunpack.c.l.b16 %v82
  %v231 = vunpack.c.l.b16 %v83
  %v232 = vpack.c.b16 %v169, %v168
  %v233 = vpack.c.b16 %v171, %v170
  %v234 = vpack.c.b16 %v173, %v172
  %v235 = vpack.c.b16 %v175, %v174
  %v236 = vpack.c.b16 %v177, %v176
  %v237 = vpack.c.b16 %v179, %v178
  %v238 = vpack.c.b16 %v181, %v180
  %v239 = vpack.c.b16 %v183, %v182
  %v240 = vpack.c.b16 %v185, %v184
  %v241 = vpack.c.b16 %v187, %v186
  %v242 = vpack.c.b16 %v189, %v188
  %v243 = vpack.c.b16 %v191, %v190
  %v244 = vpack.c.b16 %v193, %v192
  %v245 = vpack.c.b16 %v195, %v194
  %v246 = vpack.c.b16 %v197, %v196
  %v247 = vpack.c.b16 %v199, %v198
  %v248 = vpack.c.b16 %v201, %v200
  %v249 = vpack.c.b16 %v203, %v202
  %v250 = vpack.c.b16 %v205, %v204
  %v251 = vpack.c.b16 %v207, %v206
  %v252 = vpack.c.b16 %v209, %v208
  %v253 = vpack.c.b16 %v211, %v210
  %v254 = vpack.c.b16 %v213, %v212
  %v255 = vpack.c.b16 %v215, %v214
  %v256 = vpack.c.b16 %v217, %v216
  %v257 = vpack.c.b16 %v219, %v218
  %v258 = vpack.c.b16 %v221, %v220
  %v259 = vpack.c.b16 %v223, %v222
  %v260 = vpack.c.b16 %v225, %v224
  %v261 = vpack.c.b16 %v227, %v226
  %v262 = vpack.c.b16 %v229, %v228
  %v263 = vpack.c.b16 %v231, %v230
  %v312 = vunpack.c.l.b16 %v84
  %v313 = vunpack.c.l.b16 %v85
  %v314 = vunpack.c.l.b16 %v86
  %v315 = vunpack.c.l.b16 %v87
  %v316 = vunpack.c.l.b16 %v88
  %v317 = vunpack.c.l.b16 %v89
  %v318 = vunpack.c.l.b16 %v90
  %v319 = vunpack.c.l.b16 %v91
  %v320 = vunpack.c.l.b16 %v92
  %v321 = vunpack.c.l.b16 %v93
  %v322 = vunpack.c.l.b16 %v94
  %v323 = vunpack.c.l.b16 %v95
  %v324 = vunpack.c.l.b16 %v96
  %v325 = vunpack.c.l.b16 %v97
  %v326 = vunpack.c.l.b16 %v98
  %v327 = vunpack.c.l.b16 %v99
  %v328 = vpack.c.b16 %v313, %v312
  %v329 = vpack.c.b16 %v315, %v314
  %v330 = vpack.c.b16 %v317, %v316
  %v331 = vpack.c.b16 %v319, %v318
  %v332 = vpack.c.b16 %v321, %v320
  %v333 = vpack.c.b16 %v323, %v322
  %v334 = vpack.c.b16 %v325, %v324
  %v335 = vpack.c.b16 %v327, %v326
  %344 = vmatpush.bf16.msra.mxu0 %v335
  %345 = vmatpush.bf16.msra.mxu0 %v334
  %346 = vmatpush.bf16.msra.mxu0 %v333
  %347 = vmatpush.bf16.msra.mxu0 %v332
  %348 = vmatpush.bf16.msra.mxu0 %v331
  %349 = vmatpush.bf16.msra.mxu0 %v330
  %350 = vmatpush.bf16.msra.mxu0 %v329
  %351 = vmatpush.bf16.msra.mxu0 %v328
  %352 = vmatmul.bf16.gmra.mxu0 %v232
  %v353 = vpop.f32.mrf.mxu0
  %v354 = vadd.f32 %v102, %v353
  %v355 = vpop.f32.mrf.mxu0
  %v356 = vadd.f32 %v102, %v355
  %357 = vmatmul.bf16.gmra.mxu0 %v233
  %v358 = vpop.f32.mrf.mxu0
  %v359 = vadd.f32 %v102, %v358
  %v360 = vpop.f32.mrf.mxu0
  %v361 = vadd.f32 %v102, %v360
  %362 = vmatmul.bf16.gmra.mxu0 %v234
  %v363 = vpop.f32.mrf.mxu0
  %v364 = vadd.f32 %v102, %v363
  %v365 = vpop.f32.mrf.mxu0
  %v366 = vadd.f32 %v102, %v365
  %367 = vmatmul.bf16.gmra.mxu0 %v235
  %v368 = vpop.f32.mrf.mxu0
  %v369 = vadd.f32 %v102, %v368
  %v370 = vpop.f32.mrf.mxu0
  %v371 = vadd.f32 %v102, %v370
  %372 = vmatmul.bf16.gmra.mxu0 %v236
  %v373 = vpop.f32.mrf.mxu0
  %v374 = vadd.f32 %v102, %v373
  %v375 = vpop.f32.mrf.mxu0
  %v376 = vadd.f32 %v102, %v375
  %377 = vmatmul.bf16.gmra.mxu0 %v237
  %v378 = vpop.f32.mrf.mxu0
  %v379 = vadd.f32 %v102, %v378
  %v380 = vpop.f32.mrf.mxu0
  %v381 = vadd.f32 %v102, %v380
  %382 = vmatmul.bf16.gmra.mxu0 %v238
  %v383 = vpop.f32.mrf.mxu0
  %v384 = vadd.f32 %v102, %v383
  %v385 = vpop.f32.mrf.mxu0
  %v386 = vadd.f32 %v102, %v385
  %387 = vmatmul.bf16.gmra.mxu0 %v239
  %v388 = vpop.f32.mrf.mxu0
  %v389 = vadd.f32 %v102, %v388
  %v390 = vpop.f32.mrf.mxu0
  %v391 = vadd.f32 %v102, %v390
  %392 = vmatmul.bf16.gmra.mxu0 %v240
  %v393 = vpop.f32.mrf.mxu0
  %v394 = vadd.f32 %v102, %v393
  %v395 = vpop.f32.mrf.mxu0
  %v396 = vadd.f32 %v102, %v395
  %397 = vmatmul.bf16.gmra.mxu0 %v241
  %v398 = vpop.f32.mrf.mxu0
  %v399 = vadd.f32 %v102, %v398
  %v400 = vpop.f32.mrf.mxu0
  %v401 = vadd.f32 %v102, %v400
  %402 = vmatmul.bf16.gmra.mxu0 %v242
  %v403 = vpop.f32.mrf.mxu0
  %v404 = vadd.f32 %v102, %v403
  %v405 = vpop.f32.mrf.mxu0
  %v406 = vadd.f32 %v102, %v405
  %407 = vmatmul.bf16.gmra.mxu0 %v243
  %v408 = vpop.f32.mrf.mxu0
  %v409 = vadd.f32 %v102, %v408
  %v410 = vpop.f32.mrf.mxu0
  %v411 = vadd.f32 %v102, %v410
  %412 = vmatmul.bf16.gmra.mxu0 %v244
  %v413 = vpop.f32.mrf.mxu0
  %v414 = vadd.f32 %v102, %v413
  %v415 = vpop.f32.mrf.mxu0
  %v416 = vadd.f32 %v102, %v415
  %417 = vmatmul.bf16.gmra.mxu0 %v245
  %v418 = vpop.f32.mrf.mxu0
  %v419 = vadd.f32 %v102, %v418
  %v420 = vpop.f32.mrf.mxu0
  %v421 = vadd.f32 %v102, %v420
  %422 = vmatmul.bf16.gmra.mxu0 %v246
  %v423 = vpop.f32.mrf.mxu0
  %v424 = vadd.f32 %v102, %v423
  %v425 = vpop.f32.mrf.mxu0
  %v426 = vadd.f32 %v102, %v425
  %427 = vmatmul.bf16.gmra.mxu0 %v247
  %v428 = vpop.f32.mrf.mxu0
  %v429 = vadd.f32 %v102, %v428
  %v430 = vpop.f32.mrf.mxu0
  %v431 = vadd.f32 %v102, %v430
  %432 = vmatmul.bf16.gmra.mxu0 %v248
  %v433 = vpop.f32.mrf.mxu0
  %v434 = vadd.f32 %v102, %v433
  %v435 = vpop.f32.mrf.mxu0
  %v436 = vadd.f32 %v102, %v435
  %437 = vmatmul.bf16.gmra.mxu0 %v249
  %v438 = vpop.f32.mrf.mxu0
  %v439 = vadd.f32 %v102, %v438
  %v440 = vpop.f32.mrf.mxu0
  %v441 = vadd.f32 %v102, %v440
  %442 = vmatmul.bf16.gmra.mxu0 %v250
  %v443 = vpop.f32.mrf.mxu0
  %v444 = vadd.f32 %v102, %v443
  %v445 = vpop.f32.mrf.mxu0
  %v446 = vadd.f32 %v102, %v445
  %447 = vmatmul.bf16.gmra.mxu0 %v251
  %v448 = vpop.f32.mrf.mxu0
  %v449 = vadd.f32 %v102, %v448
  %v450 = vpop.f32.mrf.mxu0
  %v451 = vadd.f32 %v102, %v450
  %452 = vmatmul.bf16.gmra.mxu0 %v252
  %v453 = vpop.f32.mrf.mxu0
  %v454 = vadd.f32 %v102, %v453
  %v455 = vpop.f32.mrf.mxu0
  %v456 = vadd.f32 %v102, %v455
  %457 = vmatmul.bf16.gmra.mxu0 %v253
  %v458 = vpop.f32.mrf.mxu0
  %v459 = vadd.f32 %v102, %v458
  %v460 = vpop.f32.mrf.mxu0
  %v461 = vadd.f32 %v102, %v460
  %462 = vmatmul.bf16.gmra.mxu0 %v254
  %v463 = vpop.f32.mrf.mxu0
  %v464 = vadd.f32 %v102, %v463
  %v465 = vpop.f32.mrf.mxu0
  %v466 = vadd.f32 %v102, %v465
  %467 = vmatmul.bf16.gmra.mxu0 %v255
  %v468 = vpop.f32.mrf.mxu0
  %v469 = vadd.f32 %v102, %v468
  %v470 = vpop.f32.mrf.mxu0
  %v471 = vadd.f32 %v102, %v470
  %472 = vmatmul.bf16.gmra.mxu0 %v256
  %v473 = vpop.f32.mrf.mxu0
  %v474 = vadd.f32 %v102, %v473
  %v475 = vpop.f32.mrf.mxu0
  %v476 = vadd.f32 %v102, %v475
  %477 = vmatmul.bf16.gmra.mxu0 %v257
  %v478 = vpop.f32.mrf.mxu0
  %v479 = vadd.f32 %v102, %v478
  %v480 = vpop.f32.mrf.mxu0
  %v481 = vadd.f32 %v102, %v480
  %482 = vmatmul.bf16.gmra.mxu0 %v258
  %v483 = vpop.f32.mrf.mxu0
  %v484 = vadd.f32 %v102, %v483
  %v485 = vpop.f32.mrf.mxu0
  %v486 = vadd.f32 %v102, %v485
  %487 = vmatmul.bf16.gmra.mxu0 %v259
  %v488 = vpop.f32.mrf.mxu0
  %v489 = vadd.f32 %v102, %v488
  %v490 = vpop.f32.mrf.mxu0
  %v491 = vadd.f32 %v102, %v490
  %492 = vmatmul.bf16.gmra.mxu0 %v260
  %v493 = vpop.f32.mrf.mxu0
  %v494 = vadd.f32 %v102, %v493
  %v495 = vpop.f32.mrf.mxu0
  %v496 = vadd.f32 %v102, %v495
  %497 = vmatmul.bf16.gmra.mxu0 %v261
  %v498 = vpop.f32.mrf.mxu0
  %v499 = vadd.f32 %v102, %v498
  %v500 = vpop.f32.mrf.mxu0
  %v501 = vadd.f32 %v102, %v500
  %502 = vmatmul.bf16.gmra.mxu0 %v262
  %v503 = vpop.f32.mrf.mxu0
  %v504 = vadd.f32 %v102, %v503
  %v505 = vpop.f32.mrf.mxu0
  %v506 = vadd.f32 %v102, %v505
  %507 = vmatmul.bf16.gmra.mxu0 %v263
  %v508 = vpop.f32.mrf.mxu0
  %v509 = vadd.f32 %v102, %v508
  %v510 = vpop.f32.mrf.mxu0
  %v511 = vadd.f32 %v102, %v510
  %512 = vdwg.mxu0
  %v513 = vmax.f32 %v354, 0.0
  %v514 = vmax.f32 %v356, 0.0
  %v515 = vmax.f32 %v359, 0.0
  %v516 = vmax.f32 %v361, 0.0
  %v517 = vmax.f32 %v364, 0.0
  %v518 = vmax.f32 %v366, 0.0
  %v519 = vmax.f32 %v369, 0.0
  %v520 = vmax.f32 %v371, 0.0
  %v521 = vmax.f32 %v374, 0.0
  %v522 = vmax.f32 %v376, 0.0
  %v523 = vmax.f32 %v379, 0.0
  %v524 = vmax.f32 %v381, 0.0
  %v525 = vmax.f32 %v384, 0.0
  %v526 = vmax.f32 %v386, 0.0
  %v527 = vmax.f32 %v389, 0.0
  %v528 = vmax.f32 %v391, 0.0
  %v529 = vmax.f32 %v394, 0.0
  %v530 = vmax.f32 %v396, 0.0
  %v531 = vmax.f32 %v399, 0.0
  %v532 = vmax.f32 %v401, 0.0
  %v533 = vmax.f32 %v404, 0.0
  %v534 = vmax.f32 %v406, 0.0
  %v535 = vmax.f32 %v409, 0.0
  %v536 = vmax.f32 %v411, 0.0
  %v537 = vmax.f32 %v414, 0.0
  %v538 = vmax.f32 %v416, 0.0
  %v539 = vmax.f32 %v419, 0.0
  %v540 = vmax.f32 %v421, 0.0
  %v541 = vmax.f32 %v424, 0.0
  %v542 = vmax.f32 %v426, 0.0
  %v543 = vmax.f32 %v429, 0.0
  %v544 = vmax.f32 %v431, 0.0
  %v545 = vmax.f32 %v434, 0.0
  %v546 = vmax.f32 %v436, 0.0
  %v547 = vmax.f32 %v439, 0.0
  %v548 = vmax.f32 %v441, 0.0
  %v549 = vmax.f32 %v444, 0.0
  %v550 = vmax.f32 %v446, 0.0
  %v551 = vmax.f32 %v449, 0.0
  %v552 = vmax.f32 %v451, 0.0
  %v553 = vmax.f32 %v454, 0.0
  %v554 = vmax.f32 %v456, 0.0
  %v555 = vmax.f32 %v459, 0.0
  %v556 = vmax.f32 %v461, 0.0
  %v557 = vmax.f32 %v464, 0.0
  %v558 = vmax.f32 %v466, 0.0
  %v559 = vmax.f32 %v469, 0.0
  %v560 = vmax.f32 %v471, 0.0
  %v561 = vmax.f32 %v474, 0.0
  %v562 = vmax.f32 %v476, 0.0
  %v563 = vmax.f32 %v479, 0.0
  %v564 = vmax.f32 %v481, 0.0
  %v565 = vmax.f32 %v484, 0.0
  %v566 = vmax.f32 %v486, 0.0
  %v567 = vmax.f32 %v489, 0.0
  %v568 = vmax.f32 %v491, 0.0
  %v569 = vmax.f32 %v494, 0.0
  %v570 = vmax.f32 %v496, 0.0
  %v571 = vmax.f32 %v499, 0.0
  %v572 = vmax.f32 %v501, 0.0
  %v573 = vmax.f32 %v504, 0.0
  %v574 = vmax.f32 %v506, 0.0
  %v575 = vmax.f32 %v509, 0.0
  %v576 = vmax.f32 %v511, 0.0
  %v577 = vpack.c.bf16 %v514, %v513
  %v578 = vpack.c.bf16 %v516, %v515
  %v579 = vpack.c.bf16 %v518, %v517
  %v580 = vpack.c.bf16 %v520, %v519
  %v581 = vpack.c.bf16 %v522, %v521
  %v582 = vpack.c.bf16 %v524, %v523
  %v583 = vpack.c.bf16 %v526, %v525
  %v584 = vpack.c.bf16 %v528, %v527
  %v585 = vpack.c.bf16 %v530, %v529
  %v586 = vpack.c.bf16 %v532, %v531
  %v587 = vpack.c.bf16 %v534, %v533
  %v588 = vpack.c.bf16 %v536, %v535
  %v589 = vpack.c.bf16 %v538, %v537
  %v590 = vpack.c.bf16 %v540, %v539
  %v591 = vpack.c.bf16 %v542, %v541
  %v592 = vpack.c.bf16 %v544, %v543
  %v593 = vpack.c.bf16 %v546, %v545
  %v594 = vpack.c.bf16 %v548, %v547
  %v595 = vpack.c.bf16 %v550, %v549
  %v596 = vpack.c.bf16 %v552, %v551
  %v597 = vpack.c.bf16 %v554, %v553
  %v598 = vpack.c.bf16 %v556, %v555
  %v599 = vpack.c.bf16 %v558, %v557
  %v600 = vpack.c.bf16 %v560, %v559
  %v601 = vpack.c.bf16 %v562, %v561
  %v602 = vpack.c.bf16 %v564, %v563
  %v603 = vpack.c.bf16 %v566, %v565
  %v604 = vpack.c.bf16 %v568, %v567
  %v605 = vpack.c.bf16 %v570, %v569
  %v606 = vpack.c.bf16 %v572, %v571
  %v607 = vpack.c.bf16 %v574, %v573
  %v608 = vpack.c.bf16 %v576, %v575
  %v609 = vld [vmem:[%s3] sm:$0xf]
  %v610 = vld [vmem:[%s3 + $0x4] sm:$0xf]
  %v611 = vld [vmem:[%s3 + $0x8] sm:$0xf]
  %v612 = vld [vmem:[%s3 + $0xc] sm:$0xf]
  %v613 = vld [vmem:[%s3 + $0x10] sm:$0xf]
  %v614 = vld [vmem:[%s3 + $0x14] sm:$0xf]
  %v615 = vld [vmem:[%s3 + $0x18] sm:$0xf]
  %v616 = vld [vmem:[%s3 + $0x1c] sm:$0xf]
  %v617 = vld [vmem:[%s3 + $0x20] sm:$0xf]
  %v618 = vld [vmem:[%s3 + $0x24] sm:$0xf]
  %v619 = vld [vmem:[%s3 + $0x28] sm:$0xf]
  %v620 = vld [vmem:[%s3 + $0x2c] sm:$0xf]
  %v621 = vld [vmem:[%s3 + $0x30] sm:$0xf]
  %v622 = vld [vmem:[%s3 + $0x34] sm:$0xf]
  %v623 = vld [vmem:[%s3 + $0x38] sm:$0xf]
  %v624 = vld [vmem:[%s3 + $0x3c] sm:$0xf]
  %v625 = vld [vmem:[%s4] sm:$0x1]
  %v627 = vperm.slane %v625, 0
  %v645 = vunpack.c.l.b16 %v609
  %v646 = vunpack.c.l.b16 %v610
  %v647 = vunpack.c.l.b16 %v611
  %v648 = vunpack.c.l.b16 %v612
  %v649 = vunpack.c.l.b16 %v613
  %v650 = vunpack.c.l.b16 %v614
  %v651 = vunpack.c.l.b16 %v615
  %v652 = vunpack.c.l.b16 %v616
  %v653 = vunpack.c.l.b16 %v617
  %v654 = vunpack.c.l.b16 %v618
  %v655 = vunpack.c.l.b16 %v619
  %v656 = vunpack.c.l.b16 %v620
  %v657 = vunpack.c.l.b16 %v621
  %v658 = vunpack.c.l.b16 %v622
  %v659 = vunpack.c.l.b16 %v623
  %v660 = vunpack.c.l.b16 %v624
  %v661 = vpack.c.b16 %v646, %v645
  %v662 = vpack.c.b16 %v648, %v647
  %v663 = vpack.c.b16 %v650, %v649
  %v664 = vpack.c.b16 %v652, %v651
  %v665 = vpack.c.b16 %v654, %v653
  %v666 = vpack.c.b16 %v656, %v655
  %v667 = vpack.c.b16 %v658, %v657
  %v668 = vpack.c.b16 %v660, %v659
  %677 = vmatpush.bf16.msra.mxu0 %v668
  %678 = vmatpush.bf16.msra.mxu0 %v667
  %679 = vmatpush.bf16.msra.mxu0 %v666
  %680 = vmatpush.bf16.msra.mxu0 %v665
  %681 = vmatpush.bf16.msra.mxu0 %v664
  %682 = vmatpush.bf16.msra.mxu0 %v663
  %683 = vmatpush.bf16.msra.mxu0 %v662
  %684 = vmatpush.bf16.msra.mxu0 %v661
  %685 = vmatmul.bf16.gmra.mxu0 %v577
  %v686 = vpop.f32.mrf.mxu0
  %v687 = vadd.f32 %v627, %v686
  %v688 = vpop.f32.mrf.mxu0
  %v689 = vadd.f32 %v627, %v688
  %690 = vmatmul.bf16.gmra.mxu0 %v578
  %v691 = vpop.f32.mrf.mxu0
  %v692 = vadd.f32 %v627, %v691
  %v693 = vpop.f32.mrf.mxu0
  %v694 = vadd.f32 %v627, %v693
  %695 = vmatmul.bf16.gmra.mxu0 %v579
  %v696 = vpop.f32.mrf.mxu0
  %v697 = vadd.f32 %v627, %v696
  %v698 = vpop.f32.mrf.mxu0
  %v699 = vadd.f32 %v627, %v698
  %700 = vmatmul.bf16.gmra.mxu0 %v580
  %v701 = vpop.f32.mrf.mxu0
  %v702 = vadd.f32 %v627, %v701
  %v703 = vpop.f32.mrf.mxu0
  %v704 = vadd.f32 %v627, %v703
  %705 = vmatmul.bf16.gmra.mxu0 %v581
  %v706 = vpop.f32.mrf.mxu0
  %v707 = vadd.f32 %v627, %v706
  %v708 = vpop.f32.mrf.mxu0
  %v709 = vadd.f32 %v627, %v708
  %710 = vmatmul.bf16.gmra.mxu0 %v582
  %v711 = vpop.f32.mrf.mxu0
  %v712 = vadd.f32 %v627, %v711
  %v713 = vpop.f32.mrf.mxu0
  %v714 = vadd.f32 %v627, %v713
  %715 = vmatmul.bf16.gmra.mxu0 %v583
  %v716 = vpop.f32.mrf.mxu0
  %v717 = vadd.f32 %v627, %v716
  %v718 = vpop.f32.mrf.mxu0
  %v719 = vadd.f32 %v627, %v718
  %720 = vmatmul.bf16.gmra.mxu0 %v584
  %v721 = vpop.f32.mrf.mxu0
  %v722 = vadd.f32 %v627, %v721
  %v723 = vpop.f32.mrf.mxu0
  %v724 = vadd.f32 %v627, %v723
  %725 = vmatmul.bf16.gmra.mxu0 %v585
  %v726 = vpop.f32.mrf.mxu0
  %v727 = vadd.f32 %v627, %v726
  %v728 = vpop.f32.mrf.mxu0
  %v729 = vadd.f32 %v627, %v728
  %730 = vmatmul.bf16.gmra.mxu0 %v586
  %v731 = vpop.f32.mrf.mxu0
  %v732 = vadd.f32 %v627, %v731
  %v733 = vpop.f32.mrf.mxu0
  %v734 = vadd.f32 %v627, %v733
  %735 = vmatmul.bf16.gmra.mxu0 %v587
  %v736 = vpop.f32.mrf.mxu0
  %v737 = vadd.f32 %v627, %v736
  %v738 = vpop.f32.mrf.mxu0
  %v739 = vadd.f32 %v627, %v738
  %740 = vmatmul.bf16.gmra.mxu0 %v588
  %v741 = vpop.f32.mrf.mxu0
  %v742 = vadd.f32 %v627, %v741
  %v743 = vpop.f32.mrf.mxu0
  %v744 = vadd.f32 %v627, %v743
  %745 = vmatmul.bf16.gmra.mxu0 %v589
  %v746 = vpop.f32.mrf.mxu0
  %v747 = vadd.f32 %v627, %v746
  %v748 = vpop.f32.mrf.mxu0
  %v749 = vadd.f32 %v627, %v748
  %750 = vmatmul.bf16.gmra.mxu0 %v590
  %v751 = vpop.f32.mrf.mxu0
  %v752 = vadd.f32 %v627, %v751
  %v753 = vpop.f32.mrf.mxu0
  %v754 = vadd.f32 %v627, %v753
  %755 = vmatmul.bf16.gmra.mxu0 %v591
  %v756 = vpop.f32.mrf.mxu0
  %v757 = vadd.f32 %v627, %v756
  %v758 = vpop.f32.mrf.mxu0
  %v759 = vadd.f32 %v627, %v758
  %760 = vmatmul.bf16.gmra.mxu0 %v592
  %v761 = vpop.f32.mrf.mxu0
  %v762 = vadd.f32 %v627, %v761
  %v763 = vpop.f32.mrf.mxu0
  %v764 = vadd.f32 %v627, %v763
  %765 = vmatmul.bf16.gmra.mxu0 %v593
  %v766 = vpop.f32.mrf.mxu0
  %v767 = vadd.f32 %v627, %v766
  %v768 = vpop.f32.mrf.mxu0
  %v769 = vadd.f32 %v627, %v768
  %770 = vmatmul.bf16.gmra.mxu0 %v594
  %v771 = vpop.f32.mrf.mxu0
  %v772 = vadd.f32 %v627, %v771
  %v773 = vpop.f32.mrf.mxu0
  %v774 = vadd.f32 %v627, %v773
  %775 = vmatmul.bf16.gmra.mxu0 %v595
  %v776 = vpop.f32.mrf.mxu0
  %v777 = vadd.f32 %v627, %v776
  %v778 = vpop.f32.mrf.mxu0
  %v779 = vadd.f32 %v627, %v778
  %780 = vmatmul.bf16.gmra.mxu0 %v596
  %v781 = vpop.f32.mrf.mxu0
  %v782 = vadd.f32 %v627, %v781
  %v783 = vpop.f32.mrf.mxu0
  %v784 = vadd.f32 %v627, %v783
  %785 = vmatmul.bf16.gmra.mxu0 %v597
  %v786 = vpop.f32.mrf.mxu0
  %v787 = vadd.f32 %v627, %v786
  %v788 = vpop.f32.mrf.mxu0
  %v789 = vadd.f32 %v627, %v788
  %790 = vmatmul.bf16.gmra.mxu0 %v598
  %v791 = vpop.f32.mrf.mxu0
  %v792 = vadd.f32 %v627, %v791
  %v793 = vpop.f32.mrf.mxu0
  %v794 = vadd.f32 %v627, %v793
  %795 = vmatmul.bf16.gmra.mxu0 %v599
  %v796 = vpop.f32.mrf.mxu0
  %v797 = vadd.f32 %v627, %v796
  %v798 = vpop.f32.mrf.mxu0
  %v799 = vadd.f32 %v627, %v798
  %800 = vmatmul.bf16.gmra.mxu0 %v600
  %v801 = vpop.f32.mrf.mxu0
  %v802 = vadd.f32 %v627, %v801
  %v803 = vpop.f32.mrf.mxu0
  %v804 = vadd.f32 %v627, %v803
  %805 = vmatmul.bf16.gmra.mxu0 %v601
  %v806 = vpop.f32.mrf.mxu0
  %v807 = vadd.f32 %v627, %v806
  %v808 = vpop.f32.mrf.mxu0
  %v809 = vadd.f32 %v627, %v808
  %810 = vmatmul.bf16.gmra.mxu0 %v602
  %v811 = vpop.f32.mrf.mxu0
  %v812 = vadd.f32 %v627, %v811
  %v813 = vpop.f32.mrf.mxu0
  %v814 = vadd.f32 %v627, %v813
  %815 = vmatmul.bf16.gmra.mxu0 %v603
  %v816 = vpop.f32.mrf.mxu0
  %v817 = vadd.f32 %v627, %v816
  %v818 = vpop.f32.mrf.mxu0
  %v819 = vadd.f32 %v627, %v818
  %820 = vmatmul.bf16.gmra.mxu0 %v604
  %v821 = vpop.f32.mrf.mxu0
  %v822 = vadd.f32 %v627, %v821
  %v823 = vpop.f32.mrf.mxu0
  %v824 = vadd.f32 %v627, %v823
  %825 = vmatmul.bf16.gmra.mxu0 %v605
  %v826 = vpop.f32.mrf.mxu0
  %v827 = vadd.f32 %v627, %v826
  %v828 = vpop.f32.mrf.mxu0
  %v829 = vadd.f32 %v627, %v828
  %830 = vmatmul.bf16.gmra.mxu0 %v606
  %v831 = vpop.f32.mrf.mxu0
  %v832 = vadd.f32 %v627, %v831
  %v833 = vpop.f32.mrf.mxu0
  %v834 = vadd.f32 %v627, %v833
  %835 = vmatmul.bf16.gmra.mxu0 %v607
  %v836 = vpop.f32.mrf.mxu0
  %v837 = vadd.f32 %v627, %v836
  %v838 = vpop.f32.mrf.mxu0
  %v839 = vadd.f32 %v627, %v838
  %840 = vmatmul.bf16.gmra.mxu0 %v608
  %v841 = vpop.f32.mrf.mxu0
  %v842 = vadd.f32 %v627, %v841
  %v843 = vpop.f32.mrf.mxu0
  %v844 = vadd.f32 %v627, %v843
  %845 = vdwg.mxu0
  %v846 = vmax.f32 %v687, 0.0
  %v847 = vmax.f32 %v689, 0.0
  %v848 = vmax.f32 %v692, 0.0
  %v849 = vmax.f32 %v694, 0.0
  %v850 = vmax.f32 %v697, 0.0
  %v851 = vmax.f32 %v699, 0.0
  %v852 = vmax.f32 %v702, 0.0
  %v853 = vmax.f32 %v704, 0.0
  %v854 = vmax.f32 %v707, 0.0
  %v855 = vmax.f32 %v709, 0.0
  %v856 = vmax.f32 %v712, 0.0
  %v857 = vmax.f32 %v714, 0.0
  %v858 = vmax.f32 %v717, 0.0
  %v859 = vmax.f32 %v719, 0.0
  %v860 = vmax.f32 %v722, 0.0
  %v861 = vmax.f32 %v724, 0.0
  %v862 = vmax.f32 %v727, 0.0
  %v863 = vmax.f32 %v729, 0.0
  %v864 = vmax.f32 %v732, 0.0
  %v865 = vmax.f32 %v734, 0.0
  %v866 = vmax.f32 %v737, 0.0
  %v867 = vmax.f32 %v739, 0.0
  %v868 = vmax.f32 %v742, 0.0
  %v869 = vmax.f32 %v744, 0.0
  %v870 = vmax.f32 %v747, 0.0
  %v871 = vmax.f32 %v749, 0.0
  %v872 = vmax.f32 %v752, 0.0
  %v873 = vmax.f32 %v754, 0.0
  %v874 = vmax.f32 %v757, 0.0
  %v875 = vmax.f32 %v759, 0.0
  %v876 = vmax.f32 %v762, 0.0
  %v877 = vmax.f32 %v764, 0.0
  %v878 = vmax.f32 %v767, 0.0
  %v879 = vmax.f32 %v769, 0.0
  %v880 = vmax.f32 %v772, 0.0
  %v881 = vmax.f32 %v774, 0.0
  %v882 = vmax.f32 %v777, 0.0
  %v883 = vmax.f32 %v779, 0.0
  %v884 = vmax.f32 %v782, 0.0
  %v885 = vmax.f32 %v784, 0.0
  %v886 = vmax.f32 %v787, 0.0
  %v887 = vmax.f32 %v789, 0.0
  %v888 = vmax.f32 %v792, 0.0
  %v889 = vmax.f32 %v794, 0.0
  %v890 = vmax.f32 %v797, 0.0
  %v891 = vmax.f32 %v799, 0.0
  %v892 = vmax.f32 %v802, 0.0
  %v893 = vmax.f32 %v804, 0.0
  %v894 = vmax.f32 %v807, 0.0
  %v895 = vmax.f32 %v809, 0.0
  %v896 = vmax.f32 %v812, 0.0
  %v897 = vmax.f32 %v814, 0.0
  %v898 = vmax.f32 %v817, 0.0
  %v899 = vmax.f32 %v819, 0.0
  %v900 = vmax.f32 %v822, 0.0
  %v901 = vmax.f32 %v824, 0.0
  %v902 = vmax.f32 %v827, 0.0
  %v903 = vmax.f32 %v829, 0.0
  %v904 = vmax.f32 %v832, 0.0
  %v905 = vmax.f32 %v834, 0.0
  %v906 = vmax.f32 %v837, 0.0
  %v907 = vmax.f32 %v839, 0.0
  %v908 = vmax.f32 %v842, 0.0
  %v909 = vmax.f32 %v844, 0.0
  %910 = vst [vmem:[%s5] sm:$0xff] %v846
  %911 = vst [vmem:[%s5 + $0x8] sm:$0xff] %v847
  %912 = vst [vmem:[%s5 + $0x10] sm:$0xff] %v848
  %913 = vst [vmem:[%s5 + $0x18] sm:$0xff] %v849
  %914 = vst [vmem:[%s5 + $0x20] sm:$0xff] %v850
  %915 = vst [vmem:[%s5 + $0x28] sm:$0xff] %v851
  %916 = vst [vmem:[%s5 + $0x30] sm:$0xff] %v852
  %917 = vst [vmem:[%s5 + $0x38] sm:$0xff] %v853
  %918 = vst [vmem:[%s5 + $0x40] sm:$0xff] %v854
  %919 = vst [vmem:[%s5 + $0x48] sm:$0xff] %v855
  %920 = vst [vmem:[%s5 + $0x50] sm:$0xff] %v856
  %921 = vst [vmem:[%s5 + $0x58] sm:$0xff] %v857
  %922 = vst [vmem:[%s5 + $0x60] sm:$0xff] %v858
  %923 = vst [vmem:[%s5 + $0x68] sm:$0xff] %v859
  %924 = vst [vmem:[%s5 + $0x70] sm:$0xff] %v860
  %925 = vst [vmem:[%s5 + $0x78] sm:$0xff] %v861
  %926 = vst [vmem:[%s5 + $0x80] sm:$0xff] %v862
  %927 = vst [vmem:[%s5 + $0x88] sm:$0xff] %v863
  %928 = vst [vmem:[%s5 + $0x90] sm:$0xff] %v864
  %929 = vst [vmem:[%s5 + $0x98] sm:$0xff] %v865
  %930 = vst [vmem:[%s5 + $0xa0] sm:$0xff] %v866
  %931 = vst [vmem:[%s5 + $0xa8] sm:$0xff] %v867
  %932 = vst [vmem:[%s5 + $0xb0] sm:$0xff] %v868
  %933 = vst [vmem:[%s5 + $0xb8] sm:$0xff] %v869
  %934 = vst [vmem:[%s5 + $0xc0] sm:$0xff] %v870
  %935 = vst [vmem:[%s5 + $0xc8] sm:$0xff] %v871
  %936 = vst [vmem:[%s5 + $0xd0] sm:$0xff] %v872
  %937 = vst [vmem:[%s5 + $0xd8] sm:$0xff] %v873
  %938 = vst [vmem:[%s5 + $0xe0] sm:$0xff] %v874
  %939 = vst [vmem:[%s5 + $0xe8] sm:$0xff] %v875
  %940 = vst [vmem:[%s5 + $0xf0] sm:$0xff] %v876
  %941 = vst [vmem:[%s5 + $0xf8] sm:$0xff] %v877
  %942 = vst [vmem:[%s5 + $0x100] sm:$0xff] %v878
  %943 = vst [vmem:[%s5 + $0x108] sm:$0xff] %v879
  %944 = vst [vmem:[%s5 + $0x110] sm:$0xff] %v880
  %945 = vst [vmem:[%s5 + $0x118] sm:$0xff] %v881
  %946 = vst [vmem:[%s5 + $0x120] sm:$0xff] %v882
  %947 = vst [vmem:[%s5 + $0x128] sm:$0xff] %v883
  %948 = vst [vmem:[%s5 + $0x130] sm:$0xff] %v884
  %949 = vst [vmem:[%s5 + $0x138] sm:$0xff] %v885
  %950 = vst [vmem:[%s5 + $0x140] sm:$0xff] %v886
  %951 = vst [vmem:[%s5 + $0x148] sm:$0xff] %v887
  %952 = vst [vmem:[%s5 + $0x150] sm:$0xff] %v888
  %953 = vst [vmem:[%s5 + $0x158] sm:$0xff] %v889
  %954 = vst [vmem:[%s5 + $0x160] sm:$0xff] %v890
  %955 = vst [vmem:[%s5 + $0x168] sm:$0xff] %v891
  %956 = vst [vmem:[%s5 + $0x170] sm:$0xff] %v892
  %957 = vst [vmem:[%s5 + $0x178] sm:$0xff] %v893
  %958 = vst [vmem:[%s5 + $0x180] sm:$0xff] %v894
  %959 = vst [vmem:[%s5 + $0x188] sm:$0xff] %v895
  %960 = vst [vmem:[%s5 + $0x190] sm:$0xff] %v896
  %961 = vst [vmem:[%s5 + $0x198] sm:$0xff] %v897
  %962 = vst [vmem:[%s5 + $0x1a0] sm:$0xff] %v898
  %963 = vst [vmem:[%s5 + $0x1a8] sm:$0xff] %v899
  %964 = vst [vmem:[%s5 + $0x1b0] sm:$0xff] %v900
  %965 = vst [vmem:[%s5 + $0x1b8] sm:$0xff] %v901
  %966 = vst [vmem:[%s5 + $0x1c0] sm:$0xff] %v902
  %967 = vst [vmem:[%s5 + $0x1c8] sm:$0xff] %v903
  %968 = vst [vmem:[%s5 + $0x1d0] sm:$0xff] %v904
  %969 = vst [vmem:[%s5 + $0x1d8] sm:$0xff] %v905
  %970 = vst [vmem:[%s5 + $0x1e0] sm:$0xff] %v906
  %971 = vst [vmem:[%s5 + $0x1e8] sm:$0xff] %v907
  %972 = vst [vmem:[%s5 + $0x1f0] sm:$0xff] %v908
  %973 = vst [vmem:[%s5 + $0x1f8] sm:$0xff] %v909
  // Predicated region
  $region22: #{dense_block_light_forward.1} parent=0 // pred_check
    _
  $region23: #{dense_block_light_forward.1} parent=0 // pred_check_branch
    %975 = sbr.rel (0) target = $region25
  $region24: #{dense_block_light_forward.1} parent=0 // pred_region
    _
  $region25: #{dense_block_light_forward.1} parent=0 // pred_fallthru
    _
  // Predicated region
  $region26: #{dense_block_light_forward.1} parent=0 // pred_check
    _
  $region27: #{dense_block_light_forward.1} parent=0 // pred_check_branch
    %977 = sbr.rel (0) target = $region29
  $region28: #{dense_block_light_forward.1} parent=0 // pred_region
    _
  $region29: #{dense_block_light_forward.1} parent=0 // pred_fallthru
    _

</llo_original>
